<compile_context>
chip_gen: v7x
topology: tpu7x:2x2x1
jax: 0.10.0
libtpu: 0.0.40
codegen_flags: <defaults>
</compile_context>

<pallas_src>
import functools
import math

import jax
import jax.numpy as jnp
from jax import lax
from jax.experimental import pallas as pl
from jax.experimental.pallas import tpu as pltpu


def _round_up(x, m):
    return ((x + m - 1) // m) * m


def _linear_kernel(x_ref, w_ref, b_ref, o_ref, acc_ref, *, compute_dtype):
    # x_ref: (tm, tk)  w_ref: (tn, tk)  b_ref: (1, tn)  o_ref: (tm, tn)
    # acc_ref: (tm, tn) f32 scratch, resident across the K grid axis (last axis).
    k = pl.program_id(2)

    @pl.when(k == 0)
    def _init():
        acc_ref[...] = jnp.zeros_like(acc_ref)

    x = x_ref[...]
    w = w_ref[...]
    if compute_dtype is not None:
        x = x.astype(compute_dtype)   # per-tile VPU cast, hides under the MXU
        w = w.astype(compute_dtype)   # no-op: wrapper already stored W in compute_dtype
    # Contract on in_dim (dim 1 of both operands): (tm, tk) x (tn, tk) -> (tm, tn).
    # Transposed-RHS contraction; Mosaic lowers this on the MXU (same pattern as
    # q @ k.T in the reference flash-attention kernel), no per-tile XLU transpose.
    acc_ref[...] += lax.dot_general(
        x, w,
        dimension_numbers=(((1,), (1,)), ((), ())),
        preferred_element_type=jnp.float32,
    )

    @pl.when(k == pl.num_programs(2) - 1)
    def _finalize():
        out = acc_ref[...] + b_ref[...].astype(jnp.float32)
        o_ref[...] = out.astype(o_ref.dtype)


def linear_norm(
    x,
    weight,
    bias=None,
    *,
    block_m=256,
    block_n=512,
    block_k=1024,
    compute_dtype=jnp.bfloat16,
    fallback_to_xla=False,
):
    """y = x @ weight.T + bias (nn.Linear semantics).

    x:      (..., in_dim)
    weight: (out_dim, in_dim)  -- kept in nn.Linear layout (never transposed)
    bias:   (out_dim,) or None
    compute_dtype: MXU input dtype (default bf16; accumulation stays f32).
                   Pass None for the exact (emulated) f32 MXU path.
    """
    in_dim = x.shape[-1]
    out_dim = weight.shape[0]
    lead = x.shape[:-1]
    m = int(math.prod(lead)) if lead else 1

    if bias is None:
        bias = jnp.zeros((out_dim,), dtype=x.dtype)

    # Tiny-layer escape hatch: fused XLA dot beats ~0.35us/step pallas overhead.
    if fallback_to_xla and (m * out_dim * max(in_dim, 1)) <= (64 * 128 * 256):
        y = jnp.dot(x.reshape(m, in_dim), weight.T,
                    preferred_element_type=jnp.float32) + bias.astype(jnp.float32)
        return y.astype(x.dtype).reshape(*lead, out_dim)

    # sanitize tile requests (lane/sublane alignment)
    block_m = max(8, (block_m // 8) * 8)
    block_n = max(128, (block_n // 128) * 128)
    tk_cap = max(128, (block_k // 128) * 128)

    x2 = x.reshape(m, in_dim)
    w = weight
    if compute_dtype is not None and w.dtype != compute_dtype:
        # One-time HBM cast: halves W DMA bytes + VMEM double-buffer footprint.
        w = w.astype(compute_dtype)
    b2 = bias.reshape(1, out_dim)

    # --- K tiling: tk = largest multiple of 128 <= tk_cap dividing round_up(K,128)
    k128 = _round_up(in_dim, 128)
    tk = 128
    for cand in range(min(tk_cap, k128), 127, -128):
        if k128 % cand == 0:
            tk = cand
            break
    gk = k128 // tk
    # K zero-padding is exact for the matmul; only materialized when K % 128 != 0.
    if k128 != in_dim:
        x2 = jnp.pad(x2, ((0, 0), (0, k128 - in_dim)))
        w = jnp.pad(w, ((0, 0), (0, k128 - in_dim)))

    # --- M / N tiles: NO wrapper-side padding; Pallas masks ragged edge tiles.
    tm = m if m <= block_m else block_m          # block_m is a multiple of 8
    tn = out_dim if out_dim <= block_n else block_n   # block_n is a multiple of 128
    gm = pl.cdiv(m, tm)
    gn = pl.cdiv(out_dim, tn)

    # v7x has 2 TensorCores: make sure there are >=2 parallel tiles to shard.
    if gm * gn == 1 and m >= 128:
        tm = _round_up(pl.cdiv(m, 2), 8)
        gm = pl.cdiv(m, tm)

    # Grid order: N outer, M inner-parallel, K last ("arbitrary").
    # With gk == 1 (common case) the W tile index (j, 0) is constant across the
    # inner M sweep, so Pallas skips its re-DMA -> W streamed once per N tile.
    grid = (gn, gm, gk)

    kernel = functools.partial(_linear_kernel, compute_dtype=compute_dtype)

    out_itemsize = jnp.dtype(x.dtype).itemsize
    cost = pl.CostEstimate(
        flops=2 * m * out_dim * k128,
        transcendentals=0,
        bytes_accessed=(m * k128 * x2.dtype.itemsize
                        + out_dim * k128 * w.dtype.itemsize
                        + out_dim * b2.dtype.itemsize
                        + m * out_dim * out_itemsize),
    )

    # Raise the scoped-VMEM limit only if the double-buffered working set needs it.
    working_set = (2 * (tm * tk * x2.dtype.itemsize
                        + tn * tk * w.dtype.itemsize
                        + tn * b2.dtype.itemsize
                        + tm * tn * out_itemsize)
                   + tm * tn * 4)
    if working_set > 12 * (1 << 20):
        vmem_limit = min(48 << 20, _round_up(int(1.5 * working_set), 1 << 20))
    else:
        vmem_limit = None

    out = pl.pallas_call(
        kernel,
        out_shape=jax.ShapeDtypeStruct((m, out_dim), x.dtype),
        grid_spec=pltpu.PrefetchScalarGridSpec(
            num_scalar_prefetch=0,
            grid=grid,
            in_specs=[
                pl.BlockSpec((tm, tk), lambda j, i, k: (i, k)),   # x tile
                pl.BlockSpec((tn, tk), lambda j, i, k: (j, k)),   # W tile (nn.Linear layout)
                pl.BlockSpec((1, tn), lambda j, i, k: (0, j)),    # bias tile
            ],
            out_specs=pl.BlockSpec((tm, tn), lambda j, i, k: (i, j)),
            scratch_shapes=[pltpu.VMEM((tm, tn), jnp.float32)],
        ),
        compiler_params=pltpu.CompilerParams(
            dimension_semantics=("parallel", "parallel", "arbitrary"),
            vmem_limit_bytes=vmem_limit,
        ),
        cost_estimate=cost,
    )(x2, w, b2)

    return out.reshape(*lead, out_dim)


def init_linear_norm_params(key, in_dim, out_dim, w_init_gain="linear"):
    """Xavier-uniform weight (matches torch.nn.init.xavier_uniform_), nn.Linear bias init."""
    gain = 1.0  # calculate_gain('linear') == 1.0
    limit = gain * math.sqrt(6.0 / (in_dim + out_dim))
    wkey, bkey = jax.random.split(key)
    weight = jax.random.uniform(
        wkey, (out_dim, in_dim), dtype=jnp.float32, minval=-limit, maxval=limit
    )
    blim = 1.0 / math.sqrt(in_dim)
    bias = jax.random.uniform(
        bkey, (out_dim,), dtype=jnp.float32, minval=-blim, maxval=blim
    )
    return weight, bias


if __name__ == "__main__":
    key = jax.random.PRNGKey(0)
    kx, kp, kx2, kp2 = jax.random.split(key, 4)

    # --- small shape, default bf16 MXU path, single-tile grid -----------------
    batch, seq, in_dim, out_dim = 2, 8, 32, 64
    x = jax.random.normal(kx, (batch, seq, in_dim), dtype=jnp.float32)
    weight, bias = init_linear_norm_params(kp, in_dim, out_dim)
    y_ref = (jnp.dot(x.reshape(-1, in_dim), weight.T,
                     precision=lax.Precision.HIGHEST)
             + bias).reshape(batch, seq, out_dim)

    y = jax.block_until_ready(linear_norm(x, weight, bias))  # bf16 MXU, f32 accum
    assert y.shape == (batch, seq, out_dim)
    assert jnp.allclose(y, y_ref, atol=5e-2, rtol=5e-2), float(jnp.max(jnp.abs(y - y_ref)))

    # exact f32 path
    y32 = jax.block_until_ready(linear_norm(x, weight, bias, compute_dtype=None))
    assert jnp.allclose(y32, y_ref, atol=1e-3, rtol=1e-3), float(jnp.max(jnp.abs(y32 - y_ref)))

    # --- multi-tile grid: ragged M/N edges + K-accumulation path --------------
    batch2, seq2, in_dim2, out_dim2 = 2, 40, 256, 192
    x2 = jax.random.normal(kx2, (batch2, seq2, in_dim2), dtype=jnp.float32)
    w2, b2 = init_linear_norm_params(kp2, in_dim2, out_dim2)
    y2_ref = (jnp.dot(x2.reshape(-1, in_dim2), w2.T,
                      precision=lax.Precision.HIGHEST)
              + b2).reshape(batch2, seq2, out_dim2)
    y2 = jax.block_until_ready(
        linear_norm(x2, w2, b2, block_m=32, block_n=128, block_k=128,
                    compute_dtype=None)
    )
    assert y2.shape == (batch2, seq2, out_dim2)
    assert jnp.allclose(y2, y2_ref, atol=2e-3, rtol=2e-3), float(jnp.max(jnp.abs(y2 - y2_ref)))

    print("KERNEL_OK")
</pallas_src>

<mosaic_0001>
module attributes {stable_mosaic.version = 11 : i64} {
  func.func @_linear_kernel(%arg0: i32, %arg1: i32, %arg2: i32, %arg3: memref<16x128xf32, #tpu.memory_space<vmem>>, %arg4: memref<64x128xbf16, #tpu.memory_space<vmem>>, %arg5: memref<1x64xf32, #tpu.memory_space<vmem>>, %arg6: memref<16x64xf32, #tpu.memory_space<vmem>>, %arg7: memref<16x64xf32, #tpu.memory_space<vmem>>) attributes {dimension_semantics = [#tpu.dimension_semantics<parallel>, #tpu.dimension_semantics<parallel>, #tpu.dimension_semantics<arbitrary>], iteration_bounds = array<i64: 1, 1, 1>, scalar_prefetch = 0 : i64, scratch_operands = 1 : i64, tpu.core_type = #tpu.core_type<tc>, window_params = [{transform_indices = @transform_0, window_bounds = array<i64: 16, 128>}, {transform_indices = @transform_1, window_bounds = array<i64: 64, 128>}, {transform_indices = @transform_2, window_bounds = array<i64: 1, 64>}, {transform_indices = @transform_3, window_bounds = array<i64: 16, 64>}]} {
    %c0_i32 = arith.constant 0 : i32
    %0 = arith.cmpi eq, %arg2, %c0_i32 : i32
    %1 = arith.extui %0 : i1 to i32
    %c0_i32_0 = arith.constant 0 : i32
    %2 = arith.cmpi ne, %1, %c0_i32_0 : i32
    scf.if %2 {
      %cst_10 = arith.constant 0.000000e+00 : f32
      %13 = vector.broadcast %cst_10 : f32 to vector<16x64xf32>
      %c0_11 = arith.constant 0 : index
      %c0_12 = arith.constant 0 : index
      %14 = vector.load %arg7[%c0_11, %c0_12] : memref<16x64xf32, #tpu.memory_space<vmem>>, vector<16x64xf32>
      tpu.vector_store %arg7[%c0_11, %c0_12], %13 {strides = array<i32>} : memref<16x64xf32, #tpu.memory_space<vmem>>, vector<16x64xf32>,
    } else {
    }
    %c0 = arith.constant 0 : index
    %c0_1 = arith.constant 0 : index
    %3 = vector.load %arg3[%c0, %c0_1] : memref<16x128xf32, #tpu.memory_space<vmem>>, vector<16x128xf32>
    %c0_2 = arith.constant 0 : index
    %c0_3 = arith.constant 0 : index
    %4 = vector.load %arg4[%c0_2, %c0_3] : memref<64x128xbf16, #tpu.memory_space<vmem>>, vector<64x128xbf16>
    %5 = arith.truncf %3 : vector<16x128xf32> to vector<16x128xbf16>
    %c0_4 = arith.constant 0 : index
    %c0_5 = arith.constant 0 : index
    %6 = vector.load %arg7[%c0_4, %c0_5] : memref<16x64xf32, #tpu.memory_space<vmem>>, vector<16x64xf32>
    %cst = arith.constant dense<0.000000e+00> : vector<16x64xf32>
    %7 = tpu.matmul %5, %4, %cst {dimension_numbers = #tpu.dot_dimension_numbers<[1], [1], [0], [0], [0, 0, 1, 0], [], []>} : vector<16x128xbf16>, vector<64x128xbf16>, vector<16x64xf32> -> vector<16x64xf32>
    %8 = arith.addf %6, %7 : vector<16x64xf32>
    %c0_6 = arith.constant 0 : index
    %c0_7 = arith.constant 0 : index
    %9 = vector.load %arg7[%c0_6, %c0_7] : memref<16x64xf32, #tpu.memory_space<vmem>>, vector<16x64xf32>
    tpu.vector_store %arg7[%c0_6, %c0_7], %8 {strides = array<i32>} : memref<16x64xf32, #tpu.memory_space<vmem>>, vector<16x64xf32>,
    %c0_i32_8 = arith.constant 0 : i32
    %10 = arith.cmpi eq, %arg2, %c0_i32_8 : i32
    %11 = arith.extui %10 : i1 to i32
    %c0_i32_9 = arith.constant 0 : i32
    %12 = arith.cmpi ne, %11, %c0_i32_9 : i32
    scf.if %12 {
      %c0_10 = arith.constant 0 : index
      %c0_11 = arith.constant 0 : index
      %13 = vector.load %arg7[%c0_10, %c0_11] : memref<16x64xf32, #tpu.memory_space<vmem>>, vector<16x64xf32>
      %c0_12 = arith.constant 0 : index
      %c0_13 = arith.constant 0 : index
      %14 = vector.load %arg5[%c0_12, %c0_13] : memref<1x64xf32, #tpu.memory_space<vmem>>, vector<1x64xf32>
      %15 = vector.broadcast %14 : vector<1x64xf32> to vector<16x64xf32>
      %16 = arith.addf %13, %15 : vector<16x64xf32>
      %c0_14 = arith.constant 0 : index
      %c0_15 = arith.constant 0 : index
      %17 = vector.load %arg6[%c0_14, %c0_15] : memref<16x64xf32, #tpu.memory_space<vmem>>, vector<16x64xf32>
      tpu.vector_store %arg6[%c0_14, %c0_15], %16 {strides = array<i32>} : memref<16x64xf32, #tpu.memory_space<vmem>>, vector<16x64xf32>,
    } else {
    }
    return
  }
  func.func @transform_0(%arg0: i32, %arg1: i32, %arg2: i32) -> (i32, i32) {
    %c0_i32 = arith.constant 0 : i32
    return %arg1, %arg2 : i32, i32
  }
  func.func @transform_1(%arg0: i32, %arg1: i32, %arg2: i32) -> (i32, i32) {
    %c0_i32 = arith.constant 0 : i32
    return %arg0, %arg2 : i32, i32
  }
  func.func @transform_2(%arg0: i32, %arg1: i32, %arg2: i32) -> (i32, i32) {
    %c0_i32 = arith.constant 0 : i32
    %c0_i32_0 = arith.constant 0 : i32
    return %c0_i32, %arg0 : i32, i32
  }
  func.func @transform_3(%arg0: i32, %arg1: i32, %arg2: i32) -> (i32, i32) {
    %c0_i32 = arith.constant 0 : i32
    return %arg1, %arg0 : i32, i32
  }
}

</mosaic_0001>

<llo_original>
// kernel: tpu_custom_call.1
$region0: #{tpu_custom_call.1}
  #allocation0 [shape = 'u32[]', space=smem, size = 0x4, offset = 0x4, fixed_abs, tag = 'smem constant byte address 0x4 - core index']
  #allocation1 [shape = 'u32[144,128]{1,0:T(1,128)}', space=vmem, size = 0x12000, scoped, tag = 'internal scratch']
  #allocation2 [shape = 'f32[16,64]{1,0:T(8,128)}', space=vmem, size = 0x2000, scoped, tag = 'scratch operand']
  %s0 = inlined_call_operand.hbm [shape: f32[16,128], index: 0, kind: input, shape index: {}]
  %s1 = inlined_call_operand.hbm [shape: bf16[64,128], index: 1, kind: input, shape index: {}]
  %s2 = inlined_call_operand.vmem [shape: f32[1,64], index: 2, kind: input, shape index: {}]
  %s3 = inlined_call_operand.hbm [shape: f32[16,64], index: 3, kind: output, shape index: {}]
  %s4 = sld [smem:[#allocation0]]
  $region38: #{tpu_custom_call.1} parent=0
    _
  %s6 = ssub.s32 1, %s4
  %s7 = scalar_select 0, %s6, %s4
  $region1: #{tpu_custom_call.1} parent=0
    #allocation3 [shape = 'u8[8192]{0}', space=vmem, size = 0x2000, scoped, tag = 'input window, operand 0, single buffered']
    #allocation4 [shape = 's32[1]{0}', space=sflag, size = 0x4, scoped, tag = 'scoped memory for tpu_custom_call.1']
    #allocation5 [shape = 's32[1]{0}', space=sflag, size = 0x4, scoped, tag = 'scoped memory for tpu_custom_call.1']
    #allocation6 [shape = 'u8[16384]{0}', space=vmem, size = 0x4000, scoped, tag = 'input window, operand 1, single buffered']
    #allocation7 [shape = 's32[1]{0}', space=sflag, size = 0x4, scoped, tag = 'scoped memory for tpu_custom_call.1']
    #allocation8 [shape = 'u8[8192]{0}', space=vmem, size = 0x2000, scoped, tag = 'output window, operand 0, single buffered']
    %8 = vsyncpa [#allocation4], 0
    %9 = vsyncpa [#allocation7], 0
    %10 = vsyncpa [#allocation5], 0
    // Predicated region
    $region2: #{tpu_custom_call.1} parent=1 // pred_check
      _
    $region3: #{tpu_custom_call.1} parent=1 // pred_check_branch
      %12 = sbr.rel (0) target = $region5
    $region4: #{tpu_custom_call.1} parent=1 // pred_region
      %s14 = ssub.s32 256, 256
      %15 = vsyncadd [#allocation4], %s14
      %s16 = sshll.u32 [#allocation3], 4
      %s17 = int_to_ptr.vmem [resolvable:$true] %s16
      %22 = dma.hbm_to_vmem [thread:$0]  %s0, 256, %s17, [#allocation4], 128, 128, 8
    $region5: #{tpu_custom_call.1} parent=1 // pred_fallthru
      _
    // Predicated region
    $region6: #{tpu_custom_call.1} parent=1 // pred_check
      _
    $region7: #{tpu_custom_call.1} parent=1 // pred_check_branch
      %24 = sbr.rel (0) target = $region9
    $region8: #{tpu_custom_call.1} parent=1 // pred_region
      %s26 = ssub.s32 512, 512
      %27 = vsyncadd [#allocation7], %s26
      %s28 = sshll.u32 [#allocation6], 4
      %s29 = int_to_ptr.vmem [resolvable:$true] %s28
      %34 = dma.hbm_to_vmem [thread:$0]  %s1, 512, %s29, [#allocation7], 64, 64, 4
    $region9: #{tpu_custom_call.1} parent=1 // pred_fallthru
      _
    // Predicated region
    $region10: #{tpu_custom_call.1} parent=1 // pred_check
      _
    $region11: #{tpu_custom_call.1} parent=1 // pred_check_branch
      %36 = sbr.rel (0) target = $region13
    $region12: #{tpu_custom_call.1} parent=1 // pred_region
      _
    $region13: #{tpu_custom_call.1} parent=1 // pred_fallthru
      _
    // Predicated region
    $region14: #{tpu_custom_call.1} parent=1 // pred_check
      _
    $region15: #{tpu_custom_call.1} parent=1 // pred_check_branch
      %38 = sbr.rel (0) target = $region17
    $region16: #{tpu_custom_call.1} parent=1 // pred_region
      %39 = dma.done [#allocation4], 256
    $region17: #{tpu_custom_call.1} parent=1 // pred_fallthru
      _
    // Predicated region
    $region18: #{tpu_custom_call.1} parent=1 // pred_check
      _
    $region19: #{tpu_custom_call.1} parent=1 // pred_check_branch
      %41 = sbr.rel (0) target = $region21
    $region20: #{tpu_custom_call.1} parent=1 // pred_region
      %42 = dma.done [#allocation7], 512
    $region21: #{tpu_custom_call.1} parent=1 // pred_fallthru
      _
    %p44 = scmp.eq.s32.totalorder 0, 0
    // Predicated region
    $region22: #{tpu_custom_call.1} parent=1 // pred_check
      %p45 = pneg %p44
    $region23: #{tpu_custom_call.1} parent=1 // pred_check_branch
      %47 = sbr.rel (%p45) target = $region25
    $region24: #{tpu_custom_call.1} parent=1 // pred_region
      %vm48 = vcmask 523264
      %49 = vst.msk [vmem:[#allocation2] sm:$0xff] %vm48, 0.0
      %50 = vst.msk [vmem:[#allocation2 + $0x8] sm:$0xff] %vm48, 0.0
    $region25: #{tpu_custom_call.1} parent=1 // pred_fallthru
      _
    %v51 = vld [vmem:[#allocation3] sm:$0xff]
    %v52 = vld [vmem:[#allocation3 + $0x8] sm:$0xff]
    %v53 = vld [vmem:[#allocation6] sm:$0xf]
    %v54 = vld [vmem:[#allocation6 + $0x4] sm:$0xf]
    %v55 = vld [vmem:[#allocation6 + $0x8] sm:$0xf]
    %v56 = vld [vmem:[#allocation6 + $0xc] sm:$0xf]
    %v57 = vld [vmem:[#allocation6 + $0x10] sm:$0xf]
    %v58 = vld [vmem:[#allocation6 + $0x14] sm:$0xf]
    %v59 = vld [vmem:[#allocation6 + $0x18] sm:$0xf]
    %v60 = vld [vmem:[#allocation6 + $0x1c] sm:$0xf]
    %v61 = vpack.c.bf16 %v52, %v51
    %v62 = vld [vmem:[#allocation2] sm:$0xff]
    %v63 = vld [vmem:[#allocation2 + $0x8] sm:$0xff]
    %v72 = vunpack.c.l.b16 %v53
    %v73 = vunpack.c.l.b16 %v54
    %v74 = vunpack.c.l.b16 %v55
    %v75 = vunpack.c.l.b16 %v56
    %v76 = vunpack.c.l.b16 %v57
    %v77 = vunpack.c.l.b16 %v58
    %v78 = vunpack.c.l.b16 %v59
    %v79 = vunpack.c.l.b16 %v60
    %v80 = vpack.c.b16 %v73, %v72
    %v81 = vpack.c.b16 %v75, %v74
    %v82 = vpack.c.b16 %v77, %v76
    %v83 = vpack.c.b16 %v79, %v78
    %88 = vmatprep.subr.bf16.mxu0 0
    %89 = vmatpush1.bf16.xpose.msra.mxu0 %v80
    %90 = vmatprep.subr.bf16.mxu0 0
    %91 = vmatpush1.bf16.xpose.msra.mxu0 %v81
    %92 = vmatprep.subr.bf16.mxu0 0
    %93 = vmatpush1.bf16.xpose.msra.mxu0 %v82
    %94 = vmatprep.subr.bf16.mxu0 0
    %95 = vmatpush1.bf16.xpose.msra.mxu0 %v83
    %96 = vmatprep.subr.bf16.mxu0 0
    %97 = vmatpush1.bf16.xpose.msra.mxu0 0
    %98 = vmatprep.subr.bf16.mxu0 0
    %99 = vmatpush1.bf16.xpose.msra.mxu0 0
    %100 = vmatprep.subr.bf16.mxu0 0
    %101 = vmatpush1.bf16.xpose.msra.mxu0 0
    %102 = vmatprep.subr.bf16.mxu0 0
    %103 = vmatpush1.bf16.xpose.msra.mxu0 0
    %104 = vmatprep.subr.bf16.mxu0 0
    %105 = vmatpush1.bf16.xpose.msra.mxu0 0
    %106 = vmatprep.subr.bf16.mxu0 0
    %107 = vmatpush1.bf16.xpose.msra.mxu0 0
    %108 = vmatprep.subr.bf16.mxu0 0
    %109 = vmatpush1.bf16.xpose.msra.mxu0 0
    %110 = vmatprep.subr.bf16.mxu0 0
    %111 = vmatpush1.bf16.xpose.msra.mxu0 0
    %112 = vmatprep.subr.bf16.mxu0 0
    %113 = vmatpush1.bf16.xpose.msra.mxu0 0
    %114 = vmatprep.subr.bf16.mxu0 0
    %115 = vmatpush1.bf16.xpose.msra.mxu0 0
    %116 = vmatprep.subr.bf16.mxu0 0
    %117 = vmatpush1.bf16.xpose.msra.mxu0 0
    %118 = vmatprep.subr.bf16.mxu0 0
    %119 = vmatpush1.bf16.xpose.msra.mxu0 0
    %120 = vmatprep.mubr.bf16.mxu0 0
    %121 = vmatmul.mubr.bf16.gmra.mrb[0].mxu0 %v61
    %v122 = vpop.f32.mrb[0].mxu0
    %v123 = vadd.f32 0.0, %v122
    %v124 = vpop.f32.mrb[0].mxu0
    %v125 = vpop.f32.mrb[0].mxu0
    %v126 = vadd.f32 0.0, %v125
    %v127 = vpop.f32.mrb[0].mxu0
    %128 = vdwg.mxu0
    %v129 = vadd.f32 %v62, %v123
    %v130 = vadd.f32 %v63, %v126
    %vm131 = vcmask 523264
    %132 = vst.msk [vmem:[#allocation2] sm:$0xff] %vm131, %v129
    %133 = vst.msk [vmem:[#allocation2 + $0x8] sm:$0xff] %vm131, %v130
    // Predicated region
    $region26: #{tpu_custom_call.1} parent=1 // pred_check
      %p134 = pneg %p44
    $region27: #{tpu_custom_call.1} parent=1 // pred_check_branch
      %136 = sbr.rel (%p134) target = $region29
    $region28: #{tpu_custom_call.1} parent=1 // pred_region
      %v137 = vld [vmem:[#allocation2] sm:$0xff]
      %v138 = vld [vmem:[#allocation2 + $0x8] sm:$0xff]
      %v139 = vld [vmem:[%s2] sm:$0x1]
      %v141 = vlaneseq
      %v142 = vshrl.u32 %v141, 7
      %v143 = vsub.s32 0, %v142
      %v144 = vrot.slane %v139, %v143
      %v146 = vadd.f32 %v137, %v144
      %v147 = vadd.f32 %v138, %v144
      %148 = vst.msk [vmem:[#allocation8] sm:$0xff] %vm131, %v146
      %149 = vst.msk [vmem:[#allocation8 + $0x8] sm:$0xff] %vm131, %v147
    $region29: #{tpu_custom_call.1} parent=1 // pred_fallthru
      _
    // Predicated region
    $region30: #{tpu_custom_call.1} parent=1 // pred_check
      _
    $region31: #{tpu_custom_call.1} parent=1 // pred_check_branch
      %151 = sbr.rel (0) target = $region33
    $region32: #{tpu_custom_call.1} parent=1 // pred_region
      %s153 = ssub.s32 256, 256
      %154 = vsyncadd [#allocation5], %s153
      %s155 = sshll.u32 [#allocation8], 4
      %s156 = int_to_ptr.vmem [resolvable:$true] %s155
      %161 = dma.vmem_to_hbm [thread:$0]  %s156, 256, %s3, [#allocation5], 128, 128, 8
    $region33: #{tpu_custom_call.1} parent=1 // pred_fallthru
      _
    // Predicated region
    $region34: #{tpu_custom_call.1} parent=1 // pred_check
      _
    $region35: #{tpu_custom_call.1} parent=1 // pred_check_branch
      %163 = sbr.rel (0) target = $region37
    $region36: #{tpu_custom_call.1} parent=1 // pred_region
      %164 = dma.done [#allocation5], 256
    $region37: #{tpu_custom_call.1} parent=1 // pred_fallthru
      _
    %165 = vsyncpa [#allocation4], 1
    %166 = vsyncpa [#allocation7], 1
    %167 = vsyncpa [#allocation5], 1

</llo_original>
